<compile_context>
chip_gen: v7x
topology: tpu7x:2x2x1
jax: 0.10.0
libtpu: 0.0.40
codegen_flags: <defaults>
</compile_context>

<pallas_src>
import functools

import jax
import jax.numpy as jnp
from jax import lax
from jax.experimental import pallas as pl
from jax.experimental.pallas import tpu as pltpu


def _round_up(x, m):
    return ((x + m - 1) // m) * m


def _chip_params():
    """(max H tile, max lane tile, min parallel lane tiles) for the local TPU."""
    th_max, tl_max, min_par = 256, 2048, 1
    try:
        kind = jax.devices()[0].device_kind.lower()
    except Exception:  # defaults are safe everywhere
        kind = ""
    if "v5e" in kind or "v5 lite" in kind or "v5litepod" in kind:
        th_max = 128          # 128-wide MXU; keeps the f32-precision matmul memory-bound
    if ("v4" in kind) or ("v5p" in kind) or ("v7" in kind):
        min_par = 2           # 2 TensorCores share the grid's "parallel" axes
    return th_max, tl_max, min_par


def _pick_lane_tiling(m, tl_max, min_tiles, allow_pad):
    """Pick (lane tile, padded lane extent).

    Prefers the largest multiple of 128 <= tl_max that divides round_up(m, 128), so the
    pad is a no-op whenever m % 128 == 0.  If only tiny exact divisors exist and
    padding is allowed, pads up to a multiple of tl_max to keep DMA rows long.  Keeps
    at least `min_tiles` lane tiles (when possible) so multi-TensorCore chips don't
    leave a core idle.
    """
    m128 = _round_up(m, 128)
    cap = min(tl_max, m128)
    best, t = 128, 128
    while t <= cap:
        if m128 % t == 0:
            best = t
        t += 128
    if allow_pad and best * 8 < cap:
        best = cap
    mp = _round_up(m128, best)
    while min_tiles > 1 and mp // best < min_tiles and best > 128:
        t, smaller = best - 128, None
        while t >= 128:
            if mp % t == 0:
                smaller = t
                break
            t -= 128
        if smaller is None:
            break
        best = smaller
    return best, mp


def _pick_h_tile_exact(h, th_max):
    """H tile dividing H exactly (multiple of 8, or H itself); None -> no good tile."""
    if h <= th_max:
        return h
    t = (th_max // 8) * 8
    while t >= 8:
        if h % t == 0:
            return t if t >= 64 else None   # tiny blocks -> too many sequential steps
        t -= 8
    return None


def _cumsum_kernel(x_ref, o_ref, carry_ref, tri_ref, *, h_axis):
    """Blocked prefix sum over the (sequential, LAST) H-block grid axis.

    x_ref/o_ref: (Th, TL) lane-dense block.  carry_ref: (1, TL) running column sums of
    all previous H blocks.  tri_ref: (Th, Th) lower-triangular ones, filled once per
    lane tile.  Correctness relies on the H-block axis being the last grid axis
    ("arbitrary", iterated innermost) and on scratch being private per TensorCore.
    """
    hi = pl.program_id(h_axis)

    @pl.when(hi == 0)
    def _init():
        carry_ref[...] = jnp.zeros_like(carry_ref)
        th = tri_ref.shape[0]
        rows = lax.broadcasted_iota(jnp.int32, (th, th), 0)
        cols = lax.broadcasted_iota(jnp.int32, (th, th), 1)
        tri_ref[...] = (rows >= cols).astype(jnp.float32)

    x_blk = x_ref[...]                         # (Th, TL)
    carry = carry_ref[...]                     # (1, TL)

    # Carry update decoupled from the MXU result (the last tri row is all ones): the
    # serial cross-step dependence is only an XLU column-reduce + VPU add on x_blk.
    carry_ref[...] = carry + jnp.sum(x_blk, axis=0, keepdims=True, dtype=jnp.float32)

    # Block-local prefix sum on the MXU at full f32 precision.
    local = jnp.dot(
        tri_ref[...],
        x_blk,
        preferred_element_type=jnp.float32,
        precision=lax.Precision.HIGHEST,
    )
    o_ref[...] = (local + carry).astype(o_ref.dtype)


def _cumsum_natural(x, th_max, tl_max, min_par):
    """Fast path for W % 128 == 0: natural (N*C, H, W) layout, no wrapper relayout."""
    n, c, h, w = x.shape
    b = n * c
    th = _pick_h_tile_exact(h, th_max)
    assert th is not None and w % 128 == 0
    min_tiles = 1 if b >= min_par else min_par
    tw, wp = _pick_lane_tiling(w, tl_max, min_tiles, allow_pad=False)
    assert wp == w

    xb = x.reshape(b, h, w)                    # leading-dim merge: free, no data movement
    grid = (b, w // tw, h // th)               # H blocks last (sequential carry axis)
    out = pl.pallas_call(
        functools.partial(_cumsum_kernel, h_axis=2),
        out_shape=jax.ShapeDtypeStruct((b, h, w), x.dtype),
        grid_spec=pltpu.PrefetchScalarGridSpec(
            num_scalar_prefetch=0,
            grid=grid,
            in_specs=[pl.BlockSpec((None, th, tw), lambda bi, wj, hi: (bi, hi, wj))],
            out_specs=pl.BlockSpec((None, th, tw), lambda bi, wj, hi: (bi, hi, wj)),
            scratch_shapes=[pltpu.VMEM((1, tw), jnp.float32),
                            pltpu.VMEM((th, th), jnp.float32)],
        ),
        compiler_params=pltpu.CompilerParams(
            dimension_semantics=("parallel", "parallel", "arbitrary"),
            vmem_limit_bytes=32 * 1024 * 1024,
        ),
        cost_estimate=pl.CostEstimate(
            flops=2 * th * b * h * w,
            transcendentals=0,
            bytes_accessed=2 * b * h * w * x.dtype.itemsize,
        ),
    )(xb)
    return out.reshape(n, c, h, w)


def _cumsum_transposed(x, th_max, tl_max, min_par):
    """General path: relayout to a lane-dense (H, N*C*W) slab, cumsum over rows."""
    n, c, h, w = x.shape
    m = n * c * w

    # Layout plumbing only: one copy in, one copy out.
    xt = jnp.transpose(x, (2, 0, 1, 3)).reshape(h, m)

    # H tiling: cap at th_max, multiple of 8 (or the full H), minimal padding.
    if h <= th_max:
        th, hp = h, h
    else:
        h8 = _round_up(h, 8)
        n_h = pl.cdiv(h8, th_max)
        th = _round_up(pl.cdiv(h8, n_h), 8)
        hp = th * n_h

    tl, mp = _pick_lane_tiling(m, tl_max, min_par, allow_pad=True)

    if (hp, mp) != (h, m):
        xt = jnp.pad(xt, ((0, hp - h), (0, mp - m)))

    grid = (mp // tl, hp // th)   # lane tiles ("parallel"), H blocks ("arbitrary", last)
    out_p = pl.pallas_call(
        functools.partial(_cumsum_kernel, h_axis=1),
        out_shape=jax.ShapeDtypeStruct((hp, mp), x.dtype),
        grid_spec=pltpu.PrefetchScalarGridSpec(
            num_scalar_prefetch=0,
            grid=grid,
            in_specs=[pl.BlockSpec((th, tl), lambda j, i: (i, j))],
            out_specs=pl.BlockSpec((th, tl), lambda j, i: (i, j)),
            scratch_shapes=[pltpu.VMEM((1, tl), jnp.float32),
                            pltpu.VMEM((th, th), jnp.float32)],
        ),
        compiler_params=pltpu.CompilerParams(
            dimension_semantics=("parallel", "arbitrary"),
            vmem_limit_bytes=32 * 1024 * 1024,
        ),
        cost_estimate=pl.CostEstimate(
            flops=2 * th * hp * mp,
            transcendentals=0,
            bytes_accessed=2 * hp * mp * x.dtype.itemsize,
        ),
    )(xt)

    out = out_p[:h, :m].reshape(h, n, c, w)
    return jnp.transpose(out, (1, 2, 0, 3))


def cumsum_dim2(x: jax.Array) -> jax.Array:
    """cumsum along axis 2 of an NCHW tensor (torch.cumsum(input, 2)) as a Pallas kernel."""
    assert x.ndim == 4, "expected a rank-4 (N, C, H, W) input"
    th_max, tl_max, min_par = _chip_params()
    _, _, h, w = x.shape
    if w % 128 == 0 and _pick_h_tile_exact(h, th_max) is not None:
        return _cumsum_natural(x, th_max, tl_max, min_par)
    return _cumsum_transposed(x, th_max, tl_max, min_par)


if __name__ == "__main__":
    # Shape from the reference model unit test: f32, rank 4, cumsum along dim 2.
    x = jax.random.normal(jax.random.PRNGKey(0), (2, 4, 16, 16), dtype=jnp.float32)
    y = jax.block_until_ready(cumsum_dim2(x))
    ref = jnp.cumsum(x, axis=2)
    assert y.shape == ref.shape and y.dtype == ref.dtype
    assert jnp.allclose(y, ref, atol=1e-5, rtol=1e-5), "mismatch (lane-dense fallback path)"

    # Also exercise the natural-layout fast path (W % 128 == 0, no wrapper relayout).
    x2 = jax.random.normal(jax.random.PRNGKey(1), (1, 2, 16, 128), dtype=jnp.float32)
    y2 = jax.block_until_ready(cumsum_dim2(x2))
    assert jnp.allclose(y2, jnp.cumsum(x2, axis=2), atol=1e-5, rtol=1e-5), \
        "mismatch (natural-layout path)"

    print("KERNEL_OK")
</pallas_src>

<mosaic_0001>
module attributes {stable_mosaic.version = 11 : i64} {
  func.func @_cumsum_kernel(%arg0: i32, %arg1: i32, %arg2: memref<16x128xf32, #tpu.memory_space<vmem>>, %arg3: memref<16x128xf32, #tpu.memory_space<vmem>>, %arg4: memref<1x128xf32, #tpu.memory_space<vmem>>, %arg5: memref<16x16xf32, #tpu.memory_space<vmem>>) attributes {dimension_semantics = [#tpu.dimension_semantics<parallel>, #tpu.dimension_semantics<arbitrary>], iteration_bounds = array<i64: 1, 1>, scalar_prefetch = 0 : i64, scratch_operands = 2 : i64, tpu.core_type = #tpu.core_type<tc>, window_params = [{transform_indices = @transform_0, window_bounds = array<i64: 16, 128>}, {transform_indices = @transform_1, window_bounds = array<i64: 16, 128>}]} {
    %c0_i32 = arith.constant 0 : i32
    %0 = arith.cmpi eq, %arg1, %c0_i32 : i32
    %1 = arith.extui %0 : i1 to i32
    %c0_i32_0 = arith.constant 0 : i32
    %2 = arith.cmpi ne, %1, %c0_i32_0 : i32
    scf.if %2 {
      %cst_11 = arith.constant 0.000000e+00 : f32
      %14 = vector.broadcast %cst_11 : f32 to vector<1x128xf32>
      %c0_12 = arith.constant 0 : index
      %c0_13 = arith.constant 0 : index
      %15 = vector.load %arg4[%c0_12, %c0_13] : memref<1x128xf32, #tpu.memory_space<vmem>>, vector<1x128xf32>
      tpu.vector_store %arg4[%c0_12, %c0_13], %14 {strides = array<i32>} : memref<1x128xf32, #tpu.memory_space<vmem>>, vector<1x128xf32>,
      %16 = tpu.iota {dimensions = array<i32: 0>} : vector<16x16xi32>
      %17 = tpu.iota {dimensions = array<i32: 1>} : vector<16x16xi32>
      %18 = arith.cmpi sge, %16, %17 : vector<16x16xi32>
      %19 = arith.extui %18 : vector<16x16xi1> to vector<16x16xi32>
      %20 = arith.sitofp %19 : vector<16x16xi32> to vector<16x16xf32>
      %c0_14 = arith.constant 0 : index
      %c0_15 = arith.constant 0 : index
      %21 = vector.load %arg5[%c0_14, %c0_15] : memref<16x16xf32, #tpu.memory_space<vmem>>, vector<16x16xf32>
      tpu.vector_store %arg5[%c0_14, %c0_15], %20 {strides = array<i32>} : memref<16x16xf32, #tpu.memory_space<vmem>>, vector<16x16xf32>,
    } else {
    }
    %c0 = arith.constant 0 : index
    %c0_1 = arith.constant 0 : index
    %3 = vector.load %arg2[%c0, %c0_1] : memref<16x128xf32, #tpu.memory_space<vmem>>, vector<16x128xf32>
    %c0_2 = arith.constant 0 : index
    %c0_3 = arith.constant 0 : index
    %4 = vector.load %arg4[%c0_2, %c0_3] : memref<1x128xf32, #tpu.memory_space<vmem>>, vector<1x128xf32>
    %cst = arith.constant dense<0.000000e+00> : vector<128xf32>
    %5 = vector.multi_reduction <add>, %3, %cst [0] : vector<16x128xf32> to vector<128xf32>
    %6 = vector.shape_cast %5 : vector<128xf32> to vector<1x128xf32>
    %7 = arith.addf %4, %6 : vector<1x128xf32>
    %c0_4 = arith.constant 0 : index
    %c0_5 = arith.constant 0 : index
    %8 = vector.load %arg4[%c0_4, %c0_5] : memref<1x128xf32, #tpu.memory_space<vmem>>, vector<1x128xf32>
    tpu.vector_store %arg4[%c0_4, %c0_5], %7 {strides = array<i32>} : memref<1x128xf32, #tpu.memory_space<vmem>>, vector<1x128xf32>,
    %c0_6 = arith.constant 0 : index
    %c0_7 = arith.constant 0 : index
    %9 = vector.load %arg5[%c0_6, %c0_7] : memref<16x16xf32, #tpu.memory_space<vmem>>, vector<16x16xf32>
    %cst_8 = arith.constant dense<0.000000e+00> : vector<16x128xf32>
    %10 = tpu.matmul %9, %3, %cst_8 {dimension_numbers = #tpu.dot_dimension_numbers<[1], [0], [0], [1], [0, 0, 1, 1], [], []>, precision = #tpu.contract_precision<fp32>} : vector<16x16xf32>, vector<16x128xf32>, vector<16x128xf32> -> vector<16x128xf32>
    %11 = vector.broadcast %4 : vector<1x128xf32> to vector<16x128xf32>
    %12 = arith.addf %10, %11 : vector<16x128xf32>
    %c0_9 = arith.constant 0 : index
    %c0_10 = arith.constant 0 : index
    %13 = vector.load %arg3[%c0_9, %c0_10] : memref<16x128xf32, #tpu.memory_space<vmem>>, vector<16x128xf32>
    tpu.vector_store %arg3[%c0_9, %c0_10], %12 {strides = array<i32>} : memref<16x128xf32, #tpu.memory_space<vmem>>, vector<16x128xf32>,
    return
  }
  func.func @transform_0(%arg0: i32, %arg1: i32) -> (i32, i32) {
    %c0_i32 = arith.constant 0 : i32
    return %arg1, %arg0 : i32, i32
  }
  func.func @transform_1(%arg0: i32, %arg1: i32) -> (i32, i32) {
    %c0_i32 = arith.constant 0 : i32
    return %arg1, %arg0 : i32, i32
  }
}

</mosaic_0001>

<llo_original>
// kernel: tpu_custom_call.1
$region0: #{tpu_custom_call.1}
  #allocation0 [shape = 'u32[]', space=smem, size = 0x4, offset = 0x4, fixed_abs, tag = 'smem constant byte address 0x4 - core index']
  #allocation1 [shape = 'u32[144,128]{1,0:T(1,128)}', space=vmem, size = 0x12000, scoped, tag = 'internal scratch']
  #allocation2 [shape = 'f32[1,128]{1,0:T(1,128)}', space=vmem, size = 0x200, scoped, tag = 'scratch operand']
  #allocation3 [shape = 'f32[16,16]{1,0:T(8,128)}', space=vmem, size = 0x2000, scoped, tag = 'scratch operand']
  %s0 = inlined_call_operand.hbm [shape: f32[16,128], index: 0, kind: input, shape index: {}]
  %s1 = inlined_call_operand.hbm [shape: f32[16,128], index: 1, kind: output, shape index: {}]
  %s2 = sld [smem:[#allocation0]]
  $region22: #{tpu_custom_call.1} parent=0
    _
  %s4 = ssub.s32 1, %s2
  %s5 = scalar_select 0, %s4, %s2
  $region1: #{tpu_custom_call.1} parent=0
    #allocation4 [shape = 'u8[8192]{0}', space=vmem, size = 0x2000, scoped, tag = 'input window, operand 0, single buffered']
    #allocation5 [shape = 's32[1]{0}', space=sflag, size = 0x4, scoped, tag = 'scoped memory for tpu_custom_call.1']
    #allocation6 [shape = 's32[1]{0}', space=sflag, size = 0x4, scoped, tag = 'scoped memory for tpu_custom_call.1']
    #allocation7 [shape = 'u8[8192]{0}', space=vmem, size = 0x2000, scoped, tag = 'output window, operand 0, single buffered']
    %6 = vsyncpa [#allocation5], 0
    %7 = vsyncpa [#allocation6], 0
    // Predicated region
    $region2: #{tpu_custom_call.1} parent=1 // pred_check
      _
    $region3: #{tpu_custom_call.1} parent=1 // pred_check_branch
      %9 = sbr.rel (0) target = $region5
    $region4: #{tpu_custom_call.1} parent=1 // pred_region
      %s11 = ssub.s32 256, 256
      %12 = vsyncadd [#allocation5], %s11
      %s13 = sshll.u32 [#allocation4], 4
      %s14 = int_to_ptr.vmem [resolvable:$true] %s13
      %19 = dma.hbm_to_vmem [thread:$0]  %s0, 256, %s14, [#allocation5], 128, 128, 8
    $region5: #{tpu_custom_call.1} parent=1 // pred_fallthru
      _
    // Predicated region
    $region6: #{tpu_custom_call.1} parent=1 // pred_check
      _
    $region7: #{tpu_custom_call.1} parent=1 // pred_check_branch
      %21 = sbr.rel (0) target = $region9
    $region8: #{tpu_custom_call.1} parent=1 // pred_region
      %22 = dma.done [#allocation5], 256
    $region9: #{tpu_custom_call.1} parent=1 // pred_fallthru
      _
    %p23 = scmp.eq.s32.totalorder 0, 0
    // Predicated region
    $region10: #{tpu_custom_call.1} parent=1 // pred_check
      %p24 = pneg %p23
    $region11: #{tpu_custom_call.1} parent=1 // pred_check_branch
      %26 = sbr.rel (%p24) target = $region13
    $region12: #{tpu_custom_call.1} parent=1 // pred_region
      %27 = vst [vmem:[#allocation2] sm:$0x1] 0.0
      %v28 = vlaneseq
      %v29 = vshrl.u32 %v28, 7
      %v30 = vadd.s32 %v29, 8
      %v31 = vlaneseq
      %v32 = vand.u32 %v31, 127
      %vm33 = vcmp.ge.s32.totalorder %v29, %v32
      %vm34 = vcmp.ge.s32.totalorder %v30, %v32
      %v35 = vsel %vm33, 1, 0
      %v36 = vsel %vm34, 1, 0
      %v37 = vcvt.s32.f32 %v35
      %v38 = vcvt.s32.f32 %v36
      %vm39 = vcmask 130048
      %40 = vst.msk [vmem:[#allocation3] sm:$0xff] %vm39, %v37
      %41 = vst.msk [vmem:[#allocation3 + $0x8] sm:$0xff] %vm39, %v38
    $region13: #{tpu_custom_call.1} parent=1 // pred_fallthru
      _
    %v42 = vld [vmem:[#allocation4] sm:$0xff]
    %v43 = vld [vmem:[#allocation4 + $0x8] sm:$0xff]
    %v44 = vld [vmem:[#allocation2] sm:$0x1]
    %v45 = vadd.f32 %v42, %v43
    %v46 = vrot.slane %v45, 4
    %v47 = vadd.f32 %v45, %v46
    %v48 = vrot.slane %v47, 2
    %v49 = vadd.f32 %v47, %v48
    %v50 = vrot.slane %v49, 1
    %v51 = vadd.f32 %v49, %v50
    %v52 = vadd.f32 %v44, %v51
    %53 = vst [vmem:[#allocation2] sm:$0x1] %v52
    %v54 = vld [vmem:[#allocation3] sm:$0xff]
    %v55 = vld [vmem:[#allocation3 + $0x8] sm:$0xff]
    %v57 = vlaneseq
    %v58 = vshrl.u32 %v57, 7
    %v59 = vsub.s32 0, %v58
    %v60 = vrot.slane %v44, %v59
    %vm62 = vcmask 130048
    %v64 = vsel %vm62, %v54, 0
    %v67 = vsel %vm62, %v55, 0
    %69 = vmatprep.subr.mxu0 0.0
    %v70 = vand.u32 %v42, 4294901760
    %71 = vmatpush1.msra.mxu0 %v70
    %72 = vmatprep.subr.mxu0 0.0
    %v73 = vand.u32 %v43, 4294901760
    %74 = vmatpush1.msra.mxu0 %v73
    %75 = vmatprep.subr.mxu0 0.0
    %76 = vmatpush1.msra.mxu0 0.0
    %77 = vmatprep.subr.mxu0 0.0
    %78 = vmatpush1.msra.mxu0 0.0
    %79 = vmatprep.subr.mxu0 0.0
    %80 = vmatpush1.msra.mxu0 0.0
    %81 = vmatprep.subr.mxu0 0.0
    %82 = vmatpush1.msra.mxu0 0.0
    %83 = vmatprep.subr.mxu0 0.0
    %84 = vmatpush1.msra.mxu0 0.0
    %85 = vmatprep.subr.mxu0 0.0
    %86 = vmatpush1.msra.mxu0 0.0
    %87 = vmatprep.subr.mxu0 0.0
    %88 = vmatpush1.msra.mxu0 0.0
    %89 = vmatprep.subr.mxu0 0.0
    %90 = vmatpush1.msra.mxu0 0.0
    %91 = vmatprep.subr.mxu0 0.0
    %92 = vmatpush1.msra.mxu0 0.0
    %93 = vmatprep.subr.mxu0 0.0
    %94 = vmatpush1.msra.mxu0 0.0
    %95 = vmatprep.subr.mxu0 0.0
    %96 = vmatpush1.msra.mxu0 0.0
    %97 = vmatprep.subr.mxu0 0.0
    %98 = vmatpush1.msra.mxu0 0.0
    %99 = vmatprep.subr.mxu0 0.0
    %100 = vmatpush1.msra.mxu0 0.0
    %101 = vmatprep.subr.mxu0 0.0
    %102 = vmatpush1.msra.mxu0 0.0
    %103 = vmatprep.subr.mxu0 0.0
    %104 = vmatpush1.msra.mxu0 0.0
    %105 = vmatprep.subr.mxu0 0.0
    %106 = vmatpush1.msra.mxu0 0.0
    %107 = vmatprep.subr.mxu0 0.0
    %108 = vmatpush1.msra.mxu0 0.0
    %109 = vmatprep.subr.mxu0 0.0
    %110 = vmatpush1.msra.mxu0 0.0
    %111 = vmatprep.subr.mxu0 0.0
    %112 = vmatpush1.msra.mxu0 0.0
    %113 = vmatprep.subr.mxu0 0.0
    %114 = vmatpush1.msra.mxu0 0.0
    %115 = vmatprep.subr.mxu0 0.0
    %116 = vmatpush1.msra.mxu0 0.0
    %117 = vmatprep.subr.mxu0 0.0
    %118 = vmatpush1.msra.mxu0 0.0
    %119 = vmatprep.subr.mxu0 0.0
    %120 = vmatpush1.msra.mxu0 0.0
    %121 = vmatprep.subr.mxu0 0.0
    %122 = vmatpush1.msra.mxu0 0.0
    %123 = vmatprep.subr.mxu0 0.0
    %124 = vmatpush1.msra.mxu0 0.0
    %125 = vmatprep.subr.mxu0 0.0
    %126 = vmatpush1.msra.mxu0 0.0
    %127 = vmatprep.subr.mxu0 0.0
    %128 = vmatpush1.msra.mxu0 0.0
    %129 = vmatprep.subr.mxu0 0.0
    %130 = vmatpush1.msra.mxu0 0.0
    %131 = vmatprep.subr.mxu0 0.0
    %132 = vmatpush1.msra.mxu0 0.0
    %133 = vmatprep.subr.mxu0 0.0
    %134 = vmatpush1.msra.mxu0 0.0
    %135 = vmatprep.mubr.f32.mxu0 0.0
    %v136 = vand.u32 %v64, 4294901760
    %v137 = vsub.f32 %v64, %v136
    %v138 = vand.u32 %v137, 4294901760
    %v139 = vsub.f32 %v137, %v138
    %v140 = vand.u32 %v139, 4294901760
    %141 = vmatmul.mubr.f32.gmra.mrb[0].mxu0 %v140
    %v142 = vpop.f32.mrb[0].mxu0
    %v143 = vadd.f32 %v60, %v142
    %v144 = vpop.f32.mrb[0].mxu0
    %145 = vmatprep.mubr.f32.mxu0 0.0
    %v146 = vand.u32 %v67, 4294901760
    %v147 = vsub.f32 %v67, %v146
    %v148 = vand.u32 %v147, 4294901760
    %v149 = vsub.f32 %v147, %v148
    %v150 = vand.u32 %v149, 4294901760
    %151 = vmatmul.mubr.f32.gmra.mrb[0].mxu0 %v150
    %v152 = vpop.f32.mrb[0].mxu0
    %v153 = vadd.f32 %v60, %v152
    %v154 = vpop.f32.mrb[0].mxu0
    %155 = vdwg.mxu0
    %156 = vmatprep.subr.mxu0 0.0
    %v157 = vand.u32 %v42, 4294901760
    %v158 = vsub.f32 %v42, %v157
    %v159 = vand.u32 %v158, 4294901760
    %v160 = vsub.f32 %v158, %v159
    %v161 = vand.u32 %v160, 4294901760
    %162 = vmatpush1.msra.mxu0 %v161
    %163 = vmatprep.subr.mxu0 0.0
    %v164 = vand.u32 %v43, 4294901760
    %v165 = vsub.f32 %v43, %v164
    %v166 = vand.u32 %v165, 4294901760
    %v167 = vsub.f32 %v165, %v166
    %v168 = vand.u32 %v167, 4294901760
    %169 = vmatpush1.msra.mxu0 %v168
    %170 = vmatprep.subr.mxu0 0.0
    %171 = vmatpush1.msra.mxu0 0.0
    %172 = vmatprep.subr.mxu0 0.0
    %173 = vmatpush1.msra.mxu0 0.0
    %174 = vmatprep.subr.mxu0 0.0
    %175 = vmatpush1.msra.mxu0 0.0
    %176 = vmatprep.subr.mxu0 0.0
    %177 = vmatpush1.msra.mxu0 0.0
    %178 = vmatprep.subr.mxu0 0.0
    %179 = vmatpush1.msra.mxu0 0.0
    %180 = vmatprep.subr.mxu0 0.0
    %181 = vmatpush1.msra.mxu0 0.0
    %182 = vmatprep.subr.mxu0 0.0
    %183 = vmatpush1.msra.mxu0 0.0
    %184 = vmatprep.subr.mxu0 0.0
    %185 = vmatpush1.msra.mxu0 0.0
    %186 = vmatprep.subr.mxu0 0.0
    %187 = vmatpush1.msra.mxu0 0.0
    %188 = vmatprep.subr.mxu0 0.0
    %189 = vmatpush1.msra.mxu0 0.0
    %190 = vmatprep.subr.mxu0 0.0
    %191 = vmatpush1.msra.mxu0 0.0
    %192 = vmatprep.subr.mxu0 0.0
    %193 = vmatpush1.msra.mxu0 0.0
    %194 = vmatprep.subr.mxu0 0.0
    %195 = vmatpush1.msra.mxu0 0.0
    %196 = vmatprep.subr.mxu0 0.0
    %197 = vmatpush1.msra.mxu0 0.0
    %198 = vmatprep.subr.mxu0 0.0
    %199 = vmatpush1.msra.mxu0 0.0
    %200 = vmatprep.subr.mxu0 0.0
    %201 = vmatpush1.msra.mxu0 0.0
    %202 = vmatprep.subr.mxu0 0.0
    %203 = vmatpush1.msra.mxu0 0.0
    %204 = vmatprep.subr.mxu0 0.0
    %205 = vmatpush1.msra.mxu0 0.0
    %206 = vmatprep.subr.mxu0 0.0
    %207 = vmatpush1.msra.mxu0 0.0
    %208 = vmatprep.subr.mxu0 0.0
    %209 = vmatpush1.msra.mxu0 0.0
    %210 = vmatprep.subr.mxu0 0.0
    %211 = vmatpush1.msra.mxu0 0.0
    %212 = vmatprep.subr.mxu0 0.0
    %213 = vmatpush1.msra.mxu0 0.0
    %214 = vmatprep.subr.mxu0 0.0
    %215 = vmatpush1.msra.mxu0 0.0
    %216 = vmatprep.subr.mxu0 0.0
    %217 = vmatpush1.msra.mxu0 0.0
    %218 = vmatprep.subr.mxu0 0.0
    %219 = vmatpush1.msra.mxu0 0.0
    %220 = vmatprep.subr.mxu0 0.0
    %221 = vmatpush1.msra.mxu0 0.0
    %222 = vmatprep.subr.mxu0 0.0
    %223 = vmatpush1.msra.mxu0 0.0
    %224 = vmatprep.subr.mxu0 0.0
    %225 = vmatpush1.msra.mxu0 0.0
    %226 = vmatprep.subr.mxu0 0.0
    %227 = vmatpush1.msra.mxu0 0.0
    %228 = vmatprep.subr.mxu0 0.0
    %229 = vmatpush1.msra.mxu0 0.0
    %230 = vmatprep.mubr.f32.mxu0 0.0
    %v231 = vand.u32 %v64, 4294901760
    %232 = vmatmul.mubr.f32.gmra.mrb[0].mxu0 %v231
    %v233 = vpop.f32.mrb[0].mxu0
    %v234 = vadd.f32 %v143, %v233
    %v235 = vpop.f32.mrb[0].mxu0
    %236 = vmatprep.mubr.f32.mxu0 0.0
    %v237 = vand.u32 %v67, 4294901760
    %238 = vmatmul.mubr.f32.gmra.mrb[0].mxu0 %v237
    %v239 = vpop.f32.mrb[0].mxu0
    %v240 = vadd.f32 %v153, %v239
    %v241 = vpop.f32.mrb[0].mxu0
    %242 = vdwg.mxu0
    %243 = vmatprep.subr.mxu0 0.0
    %v244 = vand.u32 %v42, 4294901760
    %v245 = vsub.f32 %v42, %v244
    %246 = vmatpush1.msra.mxu0 %v245
    %247 = vmatprep.subr.mxu0 0.0
    %v248 = vand.u32 %v43, 4294901760
    %v249 = vsub.f32 %v43, %v248
    %250 = vmatpush1.msra.mxu0 %v249
    %251 = vmatprep.subr.mxu0 0.0
    %252 = vmatpush1.msra.mxu0 0.0
    %253 = vmatprep.subr.mxu0 0.0
    %254 = vmatpush1.msra.mxu0 0.0
    %255 = vmatprep.subr.mxu0 0.0
    %256 = vmatpush1.msra.mxu0 0.0
    %257 = vmatprep.subr.mxu0 0.0
    %258 = vmatpush1.msra.mxu0 0.0
    %259 = vmatprep.subr.mxu0 0.0
    %260 = vmatpush1.msra.mxu0 0.0
    %261 = vmatprep.subr.mxu0 0.0
    %262 = vmatpush1.msra.mxu0 0.0
    %263 = vmatprep.subr.mxu0 0.0
    %264 = vmatpush1.msra.mxu0 0.0
    %265 = vmatprep.subr.mxu0 0.0
    %266 = vmatpush1.msra.mxu0 0.0
    %267 = vmatprep.subr.mxu0 0.0
    %268 = vmatpush1.msra.mxu0 0.0
    %269 = vmatprep.subr.mxu0 0.0
    %270 = vmatpush1.msra.mxu0 0.0
    %271 = vmatprep.subr.mxu0 0.0
    %272 = vmatpush1.msra.mxu0 0.0
    %273 = vmatprep.subr.mxu0 0.0
    %274 = vmatpush1.msra.mxu0 0.0
    %275 = vmatprep.subr.mxu0 0.0
    %276 = vmatpush1.msra.mxu0 0.0
    %277 = vmatprep.subr.mxu0 0.0
    %278 = vmatpush1.msra.mxu0 0.0
    %279 = vmatprep.subr.mxu0 0.0
    %280 = vmatpush1.msra.mxu0 0.0
    %281 = vmatprep.subr.mxu0 0.0
    %282 = vmatpush1.msra.mxu0 0.0
    %283 = vmatprep.subr.mxu0 0.0
    %284 = vmatpush1.msra.mxu0 0.0
    %285 = vmatprep.subr.mxu0 0.0
    %286 = vmatpush1.msra.mxu0 0.0
    %287 = vmatprep.subr.mxu0 0.0
    %288 = vmatpush1.msra.mxu0 0.0
    %289 = vmatprep.subr.mxu0 0.0
    %290 = vmatpush1.msra.mxu0 0.0
    %291 = vmatprep.subr.mxu0 0.0
    %292 = vmatpush1.msra.mxu0 0.0
    %293 = vmatprep.subr.mxu0 0.0
    %294 = vmatpush1.msra.mxu0 0.0
    %295 = vmatprep.subr.mxu0 0.0
    %296 = vmatpush1.msra.mxu0 0.0
    %297 = vmatprep.subr.mxu0 0.0
    %298 = vmatpush1.msra.mxu0 0.0
    %299 = vmatprep.subr.mxu0 0.0
    %300 = vmatpush1.msra.mxu0 0.0
    %301 = vmatprep.subr.mxu0 0.0
    %302 = vmatpush1.msra.mxu0 0.0
    %303 = vmatprep.subr.mxu0 0.0
    %304 = vmatpush1.msra.mxu0 0.0
    %305 = vmatprep.subr.mxu0 0.0
    %306 = vmatpush1.msra.mxu0 0.0
    %307 = vmatprep.subr.mxu0 0.0
    %308 = vmatpush1.msra.mxu0 0.0
    %309 = vmatprep.subr.mxu0 0.0
    %310 = vmatpush1.msra.mxu0 0.0
    %311 = vmatprep.mubr.f32.mxu0 0.0
    %v312 = vand.u32 %v64, 4294901760
    %v313 = vsub.f32 %v64, %v312
    %314 = vmatmul.mubr.f32.gmra.mrb[0].mxu0 %v313
    %v315 = vpop.f32.mrb[0].mxu0
    %v316 = vadd.f32 %v234, %v315
    %v317 = vpop.f32.mrb[0].mxu0
    %318 = vmatprep.mubr.f32.mxu0 0.0
    %v319 = vand.u32 %v67, 4294901760
    %v320 = vsub.f32 %v67, %v319
    %321 = vmatmul.mubr.f32.gmra.mrb[0].mxu0 %v320
    %v322 = vpop.f32.mrb[0].mxu0
    %v323 = vadd.f32 %v240, %v322
    %v324 = vpop.f32.mrb[0].mxu0
    %325 = vdwg.mxu0
    %326 = vmatprep.subr.mxu0 0.0
    %v327 = vand.u32 %v42, 4294901760
    %328 = vmatpush1.msra.mxu0 %v327
    %329 = vmatprep.subr.mxu0 0.0
    %v330 = vand.u32 %v43, 4294901760
    %331 = vmatpush1.msra.mxu0 %v330
    %332 = vmatprep.subr.mxu0 0.0
    %333 = vmatpush1.msra.mxu0 0.0
    %334 = vmatprep.subr.mxu0 0.0
    %335 = vmatpush1.msra.mxu0 0.0
    %336 = vmatprep.subr.mxu0 0.0
    %337 = vmatpush1.msra.mxu0 0.0
    %338 = vmatprep.subr.mxu0 0.0
    %339 = vmatpush1.msra.mxu0 0.0
    %340 = vmatprep.subr.mxu0 0.0
    %341 = vmatpush1.msra.mxu0 0.0
    %342 = vmatprep.subr.mxu0 0.0
    %343 = vmatpush1.msra.mxu0 0.0
    %344 = vmatprep.subr.mxu0 0.0
    %345 = vmatpush1.msra.mxu0 0.0
    %346 = vmatprep.subr.mxu0 0.0
    %347 = vmatpush1.msra.mxu0 0.0
    %348 = vmatprep.subr.mxu0 0.0
    %349 = vmatpush1.msra.mxu0 0.0
    %350 = vmatprep.subr.mxu0 0.0
    %351 = vmatpush1.msra.mxu0 0.0
    %352 = vmatprep.subr.mxu0 0.0
    %353 = vmatpush1.msra.mxu0 0.0
    %354 = vmatprep.subr.mxu0 0.0
    %355 = vmatpush1.msra.mxu0 0.0
    %356 = vmatprep.subr.mxu0 0.0
    %357 = vmatpush1.msra.mxu0 0.0
    %358 = vmatprep.subr.mxu0 0.0
    %359 = vmatpush1.msra.mxu0 0.0
    %360 = vmatprep.subr.mxu0 0.0
    %361 = vmatpush1.msra.mxu0 0.0
    %362 = vmatprep.subr.mxu0 0.0
    %363 = vmatpush1.msra.mxu0 0.0
    %364 = vmatprep.subr.mxu0 0.0
    %365 = vmatpush1.msra.mxu0 0.0
    %366 = vmatprep.subr.mxu0 0.0
    %367 = vmatpush1.msra.mxu0 0.0
    %368 = vmatprep.subr.mxu0 0.0
    %369 = vmatpush1.msra.mxu0 0.0
    %370 = vmatprep.subr.mxu0 0.0
    %371 = vmatpush1.msra.mxu0 0.0
    %372 = vmatprep.subr.mxu0 0.0
    %373 = vmatpush1.msra.mxu0 0.0
    %374 = vmatprep.subr.mxu0 0.0
    %375 = vmatpush1.msra.mxu0 0.0
    %376 = vmatprep.subr.mxu0 0.0
    %377 = vmatpush1.msra.mxu0 0.0
    %378 = vmatprep.subr.mxu0 0.0
    %379 = vmatpush1.msra.mxu0 0.0
    %380 = vmatprep.subr.mxu0 0.0
    %381 = vmatpush1.msra.mxu0 0.0
    %382 = vmatprep.subr.mxu0 0.0
    %383 = vmatpush1.msra.mxu0 0.0
    %384 = vmatprep.subr.mxu0 0.0
    %385 = vmatpush1.msra.mxu0 0.0
    %386 = vmatprep.subr.mxu0 0.0
    %387 = vmatpush1.msra.mxu0 0.0
    %388 = vmatprep.subr.mxu0 0.0
    %389 = vmatpush1.msra.mxu0 0.0
    %390 = vmatprep.subr.mxu0 0.0
    %391 = vmatpush1.msra.mxu0 0.0
    %392 = vmatprep.mubr.f32.mxu0 0.0
    %v393 = vand.u32 %v64, 4294901760
    %v394 = vsub.f32 %v64, %v393
    %v395 = vand.u32 %v394, 4294901760
    %396 = vmatmul.mubr.f32.gmra.mrb[0].mxu0 %v395
    %v397 = vpop.f32.mrb[0].mxu0
    %v398 = vadd.f32 %v316, %v397
    %v399 = vpop.f32.mrb[0].mxu0
    %400 = vmatprep.mubr.f32.mxu0 0.0
    %v401 = vand.u32 %v67, 4294901760
    %v402 = vsub.f32 %v67, %v401
    %v403 = vand.u32 %v402, 4294901760
    %404 = vmatmul.mubr.f32.gmra.mrb[0].mxu0 %v403
    %v405 = vpop.f32.mrb[0].mxu0
    %v406 = vadd.f32 %v323, %v405
    %v407 = vpop.f32.mrb[0].mxu0
    %408 = vdwg.mxu0
    %409 = vmatprep.subr.mxu0 0.0
    %v410 = vand.u32 %v42, 4294901760
    %v411 = vsub.f32 %v42, %v410
    %v412 = vand.u32 %v411, 4294901760
    %413 = vmatpush1.msra.mxu0 %v412
    %414 = vmatprep.subr.mxu0 0.0
    %v415 = vand.u32 %v43, 4294901760
    %v416 = vsub.f32 %v43, %v415
    %v417 = vand.u32 %v416, 4294901760
    %418 = vmatpush1.msra.mxu0 %v417
    %419 = vmatprep.subr.mxu0 0.0
    %420 = vmatpush1.msra.mxu0 0.0
    %421 = vmatprep.subr.mxu0 0.0
    %422 = vmatpush1.msra.mxu0 0.0
    %423 = vmatprep.subr.mxu0 0.0
    %424 = vmatpush1.msra.mxu0 0.0
    %425 = vmatprep.subr.mxu0 0.0
    %426 = vmatpush1.msra.mxu0 0.0
    %427 = vmatprep.subr.mxu0 0.0
    %428 = vmatpush1.msra.mxu0 0.0
    %429 = vmatprep.subr.mxu0 0.0
    %430 = vmatpush1.msra.mxu0 0.0
    %431 = vmatprep.subr.mxu0 0.0
    %432 = vmatpush1.msra.mxu0 0.0
    %433 = vmatprep.subr.mxu0 0.0
    %434 = vmatpush1.msra.mxu0 0.0
    %435 = vmatprep.subr.mxu0 0.0
    %436 = vmatpush1.msra.mxu0 0.0
    %437 = vmatprep.subr.mxu0 0.0
    %438 = vmatpush1.msra.mxu0 0.0
    %439 = vmatprep.subr.mxu0 0.0
    %440 = vmatpush1.msra.mxu0 0.0
    %441 = vmatprep.subr.mxu0 0.0
    %442 = vmatpush1.msra.mxu0 0.0
    %443 = vmatprep.subr.mxu0 0.0
    %444 = vmatpush1.msra.mxu0 0.0
    %445 = vmatprep.subr.mxu0 0.0
    %446 = vmatpush1.msra.mxu0 0.0
    %447 = vmatprep.subr.mxu0 0.0
    %448 = vmatpush1.msra.mxu0 0.0
    %449 = vmatprep.subr.mxu0 0.0
    %450 = vmatpush1.msra.mxu0 0.0
    %451 = vmatprep.subr.mxu0 0.0
    %452 = vmatpush1.msra.mxu0 0.0
    %453 = vmatprep.subr.mxu0 0.0
    %454 = vmatpush1.msra.mxu0 0.0
    %455 = vmatprep.subr.mxu0 0.0
    %456 = vmatpush1.msra.mxu0 0.0
    %457 = vmatprep.subr.mxu0 0.0
    %458 = vmatpush1.msra.mxu0 0.0
    %459 = vmatprep.subr.mxu0 0.0
    %460 = vmatpush1.msra.mxu0 0.0
    %461 = vmatprep.subr.mxu0 0.0
    %462 = vmatpush1.msra.mxu0 0.0
    %463 = vmatprep.subr.mxu0 0.0
    %464 = vmatpush1.msra.mxu0 0.0
    %465 = vmatprep.subr.mxu0 0.0
    %466 = vmatpush1.msra.mxu0 0.0
    %467 = vmatprep.subr.mxu0 0.0
    %468 = vmatpush1.msra.mxu0 0.0
    %469 = vmatprep.subr.mxu0 0.0
    %470 = vmatpush1.msra.mxu0 0.0
    %471 = vmatprep.subr.mxu0 0.0
    %472 = vmatpush1.msra.mxu0 0.0
    %473 = vmatprep.subr.mxu0 0.0
    %474 = vmatpush1.msra.mxu0 0.0
    %475 = vmatprep.subr.mxu0 0.0
    %476 = vmatpush1.msra.mxu0 0.0
    %477 = vmatprep.subr.mxu0 0.0
    %478 = vmatpush1.msra.mxu0 0.0
    %479 = vmatprep.mubr.f32.mxu0 0.0
    %v480 = vand.u32 %v64, 4294901760
    %481 = vmatmul.mubr.f32.gmra.mrb[0].mxu0 %v480
    %v482 = vpop.f32.mrb[0].mxu0
    %v483 = vadd.f32 %v398, %v482
    %v484 = vpop.f32.mrb[0].mxu0
    %485 = vmatprep.mubr.f32.mxu0 0.0
    %v486 = vand.u32 %v67, 4294901760
    %487 = vmatmul.mubr.f32.gmra.mrb[0].mxu0 %v486
    %v488 = vpop.f32.mrb[0].mxu0
    %v489 = vadd.f32 %v406, %v488
    %v490 = vpop.f32.mrb[0].mxu0
    %491 = vdwg.mxu0
    %492 = vmatprep.subr.mxu0 0.0
    %v493 = vand.u32 %v42, 4294901760
    %494 = vmatpush1.msra.mxu0 %v493
    %495 = vmatprep.subr.mxu0 0.0
    %v496 = vand.u32 %v43, 4294901760
    %497 = vmatpush1.msra.mxu0 %v496
    %498 = vmatprep.subr.mxu0 0.0
    %499 = vmatpush1.msra.mxu0 0.0
    %500 = vmatprep.subr.mxu0 0.0
    %501 = vmatpush1.msra.mxu0 0.0
    %502 = vmatprep.subr.mxu0 0.0
    %503 = vmatpush1.msra.mxu0 0.0
    %504 = vmatprep.subr.mxu0 0.0
    %505 = vmatpush1.msra.mxu0 0.0
    %506 = vmatprep.subr.mxu0 0.0
    %507 = vmatpush1.msra.mxu0 0.0
    %508 = vmatprep.subr.mxu0 0.0
    %509 = vmatpush1.msra.mxu0 0.0
    %510 = vmatprep.subr.mxu0 0.0
    %511 = vmatpush1.msra.mxu0 0.0
    %512 = vmatprep.subr.mxu0 0.0
    %513 = vmatpush1.msra.mxu0 0.0
    %514 = vmatprep.subr.mxu0 0.0
    %515 = vmatpush1.msra.mxu0 0.0
    %516 = vmatprep.subr.mxu0 0.0
    %517 = vmatpush1.msra.mxu0 0.0
    %518 = vmatprep.subr.mxu0 0.0
    %519 = vmatpush1.msra.mxu0 0.0
    %520 = vmatprep.subr.mxu0 0.0
    %521 = vmatpush1.msra.mxu0 0.0
    %522 = vmatprep.subr.mxu0 0.0
    %523 = vmatpush1.msra.mxu0 0.0
    %524 = vmatprep.subr.mxu0 0.0
    %525 = vmatpush1.msra.mxu0 0.0
    %526 = vmatprep.subr.mxu0 0.0
    %527 = vmatpush1.msra.mxu0 0.0
    %528 = vmatprep.subr.mxu0 0.0
    %529 = vmatpush1.msra.mxu0 0.0
    %530 = vmatprep.subr.mxu0 0.0
    %531 = vmatpush1.msra.mxu0 0.0
    %532 = vmatprep.subr.mxu0 0.0
    %533 = vmatpush1.msra.mxu0 0.0
    %534 = vmatprep.subr.mxu0 0.0
    %535 = vmatpush1.msra.mxu0 0.0
    %536 = vmatprep.subr.mxu0 0.0
    %537 = vmatpush1.msra.mxu0 0.0
    %538 = vmatprep.subr.mxu0 0.0
    %539 = vmatpush1.msra.mxu0 0.0
    %540 = vmatprep.subr.mxu0 0.0
    %541 = vmatpush1.msra.mxu0 0.0
    %542 = vmatprep.subr.mxu0 0.0
    %543 = vmatpush1.msra.mxu0 0.0
    %544 = vmatprep.subr.mxu0 0.0
    %545 = vmatpush1.msra.mxu0 0.0
    %546 = vmatprep.subr.mxu0 0.0
    %547 = vmatpush1.msra.mxu0 0.0
    %548 = vmatprep.subr.mxu0 0.0
    %549 = vmatpush1.msra.mxu0 0.0
    %550 = vmatprep.subr.mxu0 0.0
    %551 = vmatpush1.msra.mxu0 0.0
    %552 = vmatprep.subr.mxu0 0.0
    %553 = vmatpush1.msra.mxu0 0.0
    %554 = vmatprep.subr.mxu0 0.0
    %555 = vmatpush1.msra.mxu0 0.0
    %556 = vmatprep.subr.mxu0 0.0
    %557 = vmatpush1.msra.mxu0 0.0
    %558 = vmatprep.mubr.f32.mxu0 0.0
    %v559 = vand.u32 %v64, 4294901760
    %560 = vmatmul.mubr.f32.gmra.mrb[0].mxu0 %v559
    %v561 = vpop.f32.mrb[0].mxu0
    %v562 = vadd.f32 %v483, %v561
    %v563 = vpop.f32.mrb[0].mxu0
    %564 = vmatprep.mubr.f32.mxu0 0.0
    %v565 = vand.u32 %v67, 4294901760
    %566 = vmatmul.mubr.f32.gmra.mrb[0].mxu0 %v565
    %v567 = vpop.f32.mrb[0].mxu0
    %v568 = vadd.f32 %v489, %v567
    %v569 = vpop.f32.mrb[0].mxu0
    %570 = vdwg.mxu0
    %571 = vst [vmem:[#allocation7] sm:$0xff] %v562
    %572 = vst [vmem:[#allocation7 + $0x8] sm:$0xff] %v568
    // Predicated region
    $region14: #{tpu_custom_call.1} parent=1 // pred_check
      _
    $region15: #{tpu_custom_call.1} parent=1 // pred_check_branch
      %574 = sbr.rel (0) target = $region17
    $region16: #{tpu_custom_call.1} parent=1 // pred_region
      %s576 = ssub.s32 256, 256
      %577 = vsyncadd [#allocation6], %s576
      %s578 = sshll.u32 [#allocation7], 4
      %s579 = int_to_ptr.vmem [resolvable:$true] %s578
      %584 = dma.vmem_to_hbm [thread:$0]  %s579, 256, %s1, [#allocation6], 128, 128, 8
    $region17: #{tpu_custom_call.1} parent=1 // pred_fallthru
      _
    // Predicated region
    $region18: #{tpu_custom_call.1} parent=1 // pred_check
      _
    $region19: #{tpu_custom_call.1} parent=1 // pred_check_branch
      %586 = sbr.rel (0) target = $region21
    $region20: #{tpu_custom_call.1} parent=1 // pred_region
      %587 = dma.done [#allocation6], 256
    $region21: #{tpu_custom_call.1} parent=1 // pred_fallthru
      _
    %588 = vsyncpa [#allocation5], 1
    %589 = vsyncpa [#allocation6], 1

</llo_original>
